<compile_context>
chip_gen: v7x
topology: tpu7x:2x2x1
jax: 0.10.0
libtpu: 0.0.40
codegen_flags: <defaults>
</compile_context>

<pallas_src>
import functools

import jax
import jax.numpy as jnp
from jax.experimental import pallas as pl
from jax.experimental.pallas import tpu as pltpu


def _round_up(x, m):
    return ((x + m - 1) // m) * m


def _cdiv(a, b):
    return (a + b - 1) // b


def _fkr_forward_kernel(xn_ref, x_ref, cn_ref, ct_ref, w_ref, o_ref, acc_ref,
                        *, gamma, tile_centers, weight_resident):
    """One grid step: (sample tile i, center tile k) -> accumulate prediction.

    xn_ref : (TN, 1)    f32 sample squared norms (resident over k)
    x_ref  : (TN, D)    sample tile (compute dtype, fed straight to the MXU)
    cn_ref : (1, TC)    f32 center squared norms for this center tile
    ct_ref : (D, TC)    pre-transposed center tile (no in-kernel transpose)
    w_ref  : (Pp, Yp) if weight_resident else (TC, Yp)   weight (compute dtype)
    o_ref  : (TN, Yp)   output tile (original/promoted dtype)
    acc_ref: (TN, Yp)   f32 accumulator scratch, resident over k
    """
    k = pl.program_id(1)

    # (TN, D) @ (D, TC) on the MXU, f32 accumulation.
    xc = jnp.dot(x_ref[...], ct_ref[...], preferred_element_type=jnp.float32)

    # ||x||^2 + ||c||^2 - 2 x.c, clamped, then the Gaussian kernel (EUP exp).
    d2 = jnp.maximum(xn_ref[...] + cn_ref[...] - 2.0 * xc, 0.0)  # (TN, TC) f32
    kmat = jnp.exp(-gamma * d2)

    if weight_resident:
        off = pl.multiple_of(k * tile_centers, tile_centers)
        w_tile = w_ref[pl.ds(off, tile_centers), :]
    else:
        w_tile = w_ref[...]

    # Second MXU matmul: kmat (cast to the weight compute dtype) x weight.
    contrib = jnp.dot(kmat.astype(w_tile.dtype), w_tile,
                      preferred_element_type=jnp.float32)          # (TN, Yp)

    @pl.when(k == 0)
    def _():
        acc_ref[...] = contrib

    @pl.when(k != 0)
    def _():
        acc_ref[...] += contrib

    @pl.when(k == pl.num_programs(1) - 1)
    def _():
        o_ref[...] = acc_ref[...].astype(o_ref.dtype)


def fkr_eigenpro_forward(samples, centers, weight, *, bandwidth=5.0,
                         tile_n=512, tile_centers=1024,
                         compute_dtype=jnp.bfloat16,
                         weight_resident_bytes=16 << 20):
    """pred = exp(-||samples - centers||^2 / (2*bandwidth^2)) @ weight."""
    n, d = samples.shape
    p, d_c = centers.shape
    assert d == d_c
    p_w, y_dim = weight.shape
    assert p == p_w

    gamma = 1.0 / (2.0 * float(bandwidth) * float(bandwidth))
    out_dtype = jnp.promote_types(samples.dtype, weight.dtype)

    # --- tile selection -------------------------------------------------------
    # Sample axis: multiples of 8; keep >= 2 tiles when possible so the
    # "parallel" axis can be sharded across both TensorCores on v7x.
    n8 = _round_up(n, 8)
    tile_n = min(int(tile_n), n8)
    if n8 > 8 and _cdiv(n8, tile_n) < 2:
        tile_n = _round_up(_cdiv(n8, 2), 8)
    tile_n = _round_up(tile_n, 8)
    n_pad = _round_up(n8, tile_n)

    # Center axis: lane-dense multiples of 128.
    p128 = _round_up(p, 128)
    tile_centers = _round_up(min(int(tile_centers), p128), 128)
    p_pad = _round_up(p128, tile_centers)

    y_pad = _round_up(y_dim, 128)  # lane-dense output / weight columns

    # --- padding (padded centers are inert because their weight rows are 0) --
    samples_f32 = samples.astype(jnp.float32)
    centers_f32 = centers.astype(jnp.float32)
    if n_pad != n:
        samples_f32 = jnp.pad(samples_f32, ((0, n_pad - n), (0, 0)))
    if p_pad != p:
        centers_f32 = jnp.pad(centers_f32, ((0, p_pad - p), (0, 0)))
    weight_p = weight
    if (p_pad != p) or (y_pad != y_dim):
        weight_p = jnp.pad(weight, ((0, p_pad - p), (0, y_pad - y_dim)))

    # Squared norms hoisted out of the hot loop, always in f32.
    xn = jnp.sum(samples_f32 * samples_f32, axis=1, keepdims=True)   # (Np, 1)
    cn = jnp.sum(centers_f32 * centers_f32, axis=1)[None, :]         # (1, Pp)

    # MXU operands in compute dtype (bf16 default: faster MXU, half the DMA
    # bytes). Centers pre-transposed once so the kernel never transposes.
    samples_c = samples_f32.astype(compute_dtype)
    centers_t = centers_f32.T.astype(compute_dtype)                  # (D, Pp)
    weight_c = weight_p.astype(compute_dtype)

    grid = (n_pad // tile_n, p_pad // tile_centers)

    in_sz = jnp.dtype(compute_dtype).itemsize
    o_sz = jnp.dtype(out_dtype).itemsize

    # Keep the whole weight resident in VMEM when it is small enough; it is
    # then fetched once instead of being re-streamed for every sample tile.
    w_bytes = p_pad * y_pad * in_sz
    weight_resident = w_bytes <= int(weight_resident_bytes)
    if weight_resident:
        w_spec = pl.BlockSpec((p_pad, y_pad), lambda i, k: (0, 0))
    else:
        w_spec = pl.BlockSpec((tile_centers, y_pad), lambda i, k: (k, 0))

    # --- generation-aware VMEM budget ----------------------------------------
    try:
        vmem_cap = int(getattr(pltpu.get_tpu_info(), "vmem_capacity_bytes",
                               64 << 20))
    except Exception:
        vmem_cap = 64 << 20        # conservative (v7x physical)
    cap = int(vmem_cap * 0.8)      # headroom for compiler-internal scratch
    est = (2 * tile_n * d * in_sz                        # sample tile
           + 2 * tile_n * 4                              # sample norms
           + 2 * d * tile_centers * in_sz                # centers tile (D, TC)
           + 2 * tile_centers * 4                        # center norms
           + (2 * w_bytes if weight_resident
              else 2 * tile_centers * y_pad * in_sz)     # weight
           + 2 * tile_n * y_pad * o_sz                   # output tile
           + tile_n * y_pad * 4                          # f32 accumulator
           + 3 * tile_n * tile_centers * 4)              # xc / d2 / kmat
    est = int(est * 1.3)
    # Always pass a limit: v5e's default scoped limit (16 MiB) is far below
    # physical VMEM and would otherwise silently reject mid-size tiles.
    vmem_limit = int(min(max(est, 32 << 20), cap))

    cost = pl.CostEstimate(
        flops=2 * n_pad * p_pad * (d + y_pad),
        transcendentals=n_pad * p_pad,
        bytes_accessed=(n_pad * d * in_sz + p_pad * d * in_sz
                        + p_pad * y_pad * in_sz + n_pad * y_pad * o_sz
                        + (n_pad + p_pad) * 4),
    )

    kernel = functools.partial(_fkr_forward_kernel, gamma=gamma,
                               tile_centers=tile_centers,
                               weight_resident=weight_resident)

    out = pl.pallas_call(
        kernel,
        out_shape=jax.ShapeDtypeStruct((n_pad, y_pad), out_dtype),
        grid_spec=pltpu.PrefetchScalarGridSpec(
            num_scalar_prefetch=0,
            grid=grid,
            in_specs=[
                pl.BlockSpec((tile_n, 1), lambda i, k: (i, 0)),        # ||x||^2
                pl.BlockSpec((tile_n, d), lambda i, k: (i, 0)),        # samples
                pl.BlockSpec((1, tile_centers), lambda i, k: (0, k)),  # ||c||^2
                pl.BlockSpec((d, tile_centers), lambda i, k: (0, k)),  # centers^T
                w_spec,                                                # weight
            ],
            out_specs=pl.BlockSpec((tile_n, y_pad), lambda i, k: (i, 0)),
            scratch_shapes=[pltpu.VMEM((tile_n, y_pad), jnp.float32)],
        ),
        compiler_params=pltpu.CompilerParams(
            dimension_semantics=("parallel", "arbitrary"),
            vmem_limit_bytes=vmem_limit,
        ),
        cost_estimate=cost,
    )(xn, samples_c, cn, centers_t, weight_c)

    return out[:n, :y_dim]


def _reference_forward(samples, centers, weight, bandwidth=5.0):
    gamma = 1.0 / (2.0 * bandwidth * bandwidth)
    xc = jnp.dot(samples, centers.T, precision=jax.lax.Precision.HIGHEST)
    d2 = (jnp.sum(samples**2, axis=1, keepdims=True)
          + jnp.sum(centers**2, axis=1)[None, :] - 2.0 * xc)
    kmat = jnp.exp(-gamma * jnp.maximum(d2, 0.0))
    return jnp.dot(kmat, weight, precision=jax.lax.Precision.HIGHEST)


if __name__ == "__main__":
    key = jax.random.PRNGKey(0)
    k_s, k_c, k_w = jax.random.split(key, 3)

    # Small, deterministic shapes consistent with the module's forward.
    n_samples, x_dim = 40, 32
    n_centers, y_dim = 300, 16

    samples = jax.random.normal(k_s, (n_samples, x_dim), dtype=jnp.float32)
    centers = jax.random.normal(k_c, (n_centers, x_dim), dtype=jnp.float32)
    # Module __init__ uses zeros(n_centers, y_dim); use deterministic random
    # weight so the hot path is actually exercised (forward accepts weight=).
    weight = jax.random.normal(k_w, (n_centers, y_dim), dtype=jnp.float32) * 0.05

    ref = _reference_forward(samples, centers, weight)

    # 1) f32 MXU path, default (clamped) tiles, resident weight.
    pred_f32 = jax.block_until_ready(
        fkr_eigenpro_forward(samples, centers, weight,
                             compute_dtype=jnp.float32))
    assert pred_f32.shape == (n_samples, y_dim)
    assert jnp.allclose(pred_f32, ref, atol=5e-3, rtol=5e-3), "mismatch (f32)"

    # 2) bf16 MXU path (default): relaxed tolerance (bf16 inputs, f32 accum).
    pred_bf16 = jax.block_until_ready(
        fkr_eigenpro_forward(samples, centers, weight))
    assert pred_bf16.shape == (n_samples, y_dim)
    assert jnp.allclose(pred_bf16, ref, atol=5e-2, rtol=5e-2), "mismatch (bf16)"

    # 3) Small explicit tiles + streamed (non-resident) weight: exercises
    #    sample tiling, the center-axis reduction, and N/P/Y zero-padding.
    pred_tiled = jax.block_until_ready(
        fkr_eigenpro_forward(samples, centers, weight, tile_n=16,
                             tile_centers=128, compute_dtype=jnp.float32,
                             weight_resident_bytes=0))
    assert pred_tiled.shape == (n_samples, y_dim)
    assert jnp.allclose(pred_tiled, ref, atol=5e-3, rtol=5e-3), "mismatch (tiled)"

    # TODO(synk): asm_eigenpro_fn (Nystrom SVD preconditioner) and fit()/
    # evaluate() training loops are host-side orchestration, not part of the
    # forward kernel.
    print("KERNEL_OK")
</pallas_src>

<mosaic_0001>
module attributes {stable_mosaic.version = 11 : i64} {
  func.func @_fkr_forward_kernel(%arg0: i32, %arg1: i32, %arg2: memref<24x1xf32, #tpu.memory_space<vmem>>, %arg3: memref<24x32xf32, #tpu.memory_space<vmem>>, %arg4: memref<1x384xf32, #tpu.memory_space<vmem>>, %arg5: memref<32x384xf32, #tpu.memory_space<vmem>>, %arg6: memref<384x128xf32, #tpu.memory_space<vmem>>, %arg7: memref<24x128xf32, #tpu.memory_space<vmem>>, %arg8: memref<24x128xf32, #tpu.memory_space<vmem>>) attributes {dimension_semantics = [#tpu.dimension_semantics<parallel>, #tpu.dimension_semantics<arbitrary>], iteration_bounds = array<i64: 2, 1>, scalar_prefetch = 0 : i64, scratch_operands = 1 : i64, tpu.core_type = #tpu.core_type<tc>, window_params = [{transform_indices = @transform_0, window_bounds = array<i64: 24, 1>}, {transform_indices = @transform_1, window_bounds = array<i64: 24, 32>}, {transform_indices = @transform_2, window_bounds = array<i64: 1, 384>}, {transform_indices = @transform_3, window_bounds = array<i64: 32, 384>}, {pipeline_mode = #tpu.pipeline_mode<synchronous>, transform_indices = @transform_4, window_bounds = array<i64: 384, 128>}, {transform_indices = @transform_5, window_bounds = array<i64: 24, 128>}]} {
    %c0 = arith.constant 0 : index
    %c0_0 = arith.constant 0 : index
    %0 = vector.load %arg3[%c0, %c0_0] : memref<24x32xf32, #tpu.memory_space<vmem>>, vector<24x32xf32>
    %c0_1 = arith.constant 0 : index
    %c0_2 = arith.constant 0 : index
    %1 = vector.load %arg5[%c0_1, %c0_2] : memref<32x384xf32, #tpu.memory_space<vmem>>, vector<32x384xf32>
    %cst = arith.constant dense<0.000000e+00> : vector<24x384xf32>
    %2 = tpu.matmul %0, %1, %cst {dimension_numbers = #tpu.dot_dimension_numbers<[1], [0], [0], [1], [0, 0, 1, 1], [], []>} : vector<24x32xf32>, vector<32x384xf32>, vector<24x384xf32> -> vector<24x384xf32>
    %c0_3 = arith.constant 0 : index
    %c0_4 = arith.constant 0 : index
    %3 = vector.load %arg2[%c0_3, %c0_4] : memref<24x1xf32, #tpu.memory_space<vmem>>, vector<24x1xf32>
    %c0_5 = arith.constant 0 : index
    %c0_6 = arith.constant 0 : index
    %4 = vector.load %arg4[%c0_5, %c0_6] : memref<1x384xf32, #tpu.memory_space<vmem>>, vector<1x384xf32>
    %5 = vector.broadcast %3 : vector<24x1xf32> to vector<24x384xf32>
    %6 = vector.broadcast %4 : vector<1x384xf32> to vector<24x384xf32>
    %7 = arith.addf %5, %6 : vector<24x384xf32>
    %cst_7 = arith.constant 2.000000e+00 : f32
    %8 = vector.broadcast %cst_7 : f32 to vector<24x384xf32>
    %9 = arith.mulf %8, %2 : vector<24x384xf32>
    %10 = arith.subf %7, %9 : vector<24x384xf32>
    %cst_8 = arith.constant 0.000000e+00 : f32
    %11 = vector.broadcast %cst_8 : f32 to vector<24x384xf32>
    %12 = arith.maximumf %10, %11 : vector<24x384xf32>
    %cst_9 = arith.constant -2.000000e-02 : f32
    %13 = vector.broadcast %cst_9 : f32 to vector<24x384xf32>
    %14 = arith.mulf %13, %12 : vector<24x384xf32>
    %15 = math.exp %14 : vector<24x384xf32>
    %c384_i32 = arith.constant 384 : i32
    %16 = arith.muli %arg1, %c384_i32 : i32
    %17 = tpu.assume_multiple %16, 384 : i32
    %18 = arith.index_cast %17 : i32 to index
    %c0_10 = arith.constant 0 : index
    %19 = vector.load %arg6[%18, %c0_10] : memref<384x128xf32, #tpu.memory_space<vmem>>, vector<384x128xf32>
    %cst_11 = arith.constant dense<0.000000e+00> : vector<24x128xf32>
    %20 = tpu.matmul %15, %19, %cst_11 {dimension_numbers = #tpu.dot_dimension_numbers<[1], [0], [0], [1], [0, 0, 1, 1], [], []>} : vector<24x384xf32>, vector<384x128xf32>, vector<24x128xf32> -> vector<24x128xf32>
    %c0_i32 = arith.constant 0 : i32
    %21 = arith.cmpi eq, %arg1, %c0_i32 : i32
    %22 = arith.extui %21 : i1 to i32
    %c0_i32_12 = arith.constant 0 : i32
    %23 = arith.cmpi ne, %22, %c0_i32_12 : i32
    scf.if %23 {
      %c0_17 = arith.constant 0 : index
      %c0_18 = arith.constant 0 : index
      %30 = vector.load %arg8[%c0_17, %c0_18] : memref<24x128xf32, #tpu.memory_space<vmem>>, vector<24x128xf32>
      tpu.vector_store %arg8[%c0_17, %c0_18], %20 {strides = array<i32>} : memref<24x128xf32, #tpu.memory_space<vmem>>, vector<24x128xf32>,
    } else {
    }
    %c0_i32_13 = arith.constant 0 : i32
    %24 = arith.cmpi ne, %arg1, %c0_i32_13 : i32
    %25 = arith.extui %24 : i1 to i32
    %c0_i32_14 = arith.constant 0 : i32
    %26 = arith.cmpi ne, %25, %c0_i32_14 : i32
    scf.if %26 {
      %c0_17 = arith.constant 0 : index
      %c0_18 = arith.constant 0 : index
      %30 = vector.load %arg8[%c0_17, %c0_18] : memref<24x128xf32, #tpu.memory_space<vmem>>, vector<24x128xf32>
      %31 = arith.addf %30, %20 : vector<24x128xf32>
      %c0_19 = arith.constant 0 : index
      %c0_20 = arith.constant 0 : index
      %32 = vector.load %arg8[%c0_19, %c0_20] : memref<24x128xf32, #tpu.memory_space<vmem>>, vector<24x128xf32>
      tpu.vector_store %arg8[%c0_19, %c0_20], %31 {strides = array<i32>} : memref<24x128xf32, #tpu.memory_space<vmem>>, vector<24x128xf32>,
    } else {
    }
    %c0_i32_15 = arith.constant 0 : i32
    %27 = arith.cmpi eq, %arg1, %c0_i32_15 : i32
    %28 = arith.extui %27 : i1 to i32
    %c0_i32_16 = arith.constant 0 : i32
    %29 = arith.cmpi ne, %28, %c0_i32_16 : i32
    scf.if %29 {
      %c0_17 = arith.constant 0 : index
      %c0_18 = arith.constant 0 : index
      %30 = vector.load %arg8[%c0_17, %c0_18] : memref<24x128xf32, #tpu.memory_space<vmem>>, vector<24x128xf32>
      %c0_19 = arith.constant 0 : index
      %c0_20 = arith.constant 0 : index
      %31 = vector.load %arg7[%c0_19, %c0_20] : memref<24x128xf32, #tpu.memory_space<vmem>>, vector<24x128xf32>
      tpu.vector_store %arg7[%c0_19, %c0_20], %30 {strides = array<i32>} : memref<24x128xf32, #tpu.memory_space<vmem>>, vector<24x128xf32>,
    } else {
    }
    return
  }
  func.func @transform_0(%arg0: i32, %arg1: i32) -> (i32, i32) {
    %c0_i32 = arith.constant 0 : i32
    %c0_i32_0 = arith.constant 0 : i32
    return %arg0, %c0_i32 : i32, i32
  }
  func.func @transform_1(%arg0: i32, %arg1: i32) -> (i32, i32) {
    %c0_i32 = arith.constant 0 : i32
    %c0_i32_0 = arith.constant 0 : i32
    return %arg0, %c0_i32 : i32, i32
  }
  func.func @transform_2(%arg0: i32, %arg1: i32) -> (i32, i32) {
    %c0_i32 = arith.constant 0 : i32
    %c0_i32_0 = arith.constant 0 : i32
    return %c0_i32, %arg1 : i32, i32
  }
  func.func @transform_3(%arg0: i32, %arg1: i32) -> (i32, i32) {
    %c0_i32 = arith.constant 0 : i32
    %c0_i32_0 = arith.constant 0 : i32
    return %c0_i32, %arg1 : i32, i32
  }
  func.func @transform_4(%arg0: i32, %arg1: i32) -> (i32, i32) {
    %c0_i32 = arith.constant 0 : i32
    %c0_i32_0 = arith.constant 0 : i32
    %c0_i32_1 = arith.constant 0 : i32
    return %c0_i32, %c0_i32_0 : i32, i32
  }
  func.func @transform_5(%arg0: i32, %arg1: i32) -> (i32, i32) {
    %c0_i32 = arith.constant 0 : i32
    %c0_i32_0 = arith.constant 0 : i32
    return %arg0, %c0_i32 : i32, i32
  }
}

</mosaic_0001>

<llo_original>
// kernel: tpu_custom_call.1
$region0: #{tpu_custom_call.1}
  #allocation0 [shape = 'u32[]', space=smem, size = 0x4, offset = 0x4, fixed_abs, tag = 'smem constant byte address 0x4 - core index']
  #allocation1 [shape = 'u32[144,128]{1,0:T(1,128)}', space=vmem, size = 0x12000, scoped, tag = 'internal scratch']
  #allocation2 [shape = 'f32[24,128]{1,0:T(8,128)}', space=vmem, size = 0x3000, scoped, tag = 'scratch operand']
  %s0 = inlined_call_operand.vmem [shape: f32[48,1], index: 0, kind: input, shape index: {}]
  %s1 = inlined_call_operand.vmem [shape: f32[48,32], index: 1, kind: input, shape index: {}]
  %s2 = inlined_call_operand.vmem [shape: f32[1,384], index: 2, kind: input, shape index: {}]
  %s3 = inlined_call_operand.vmem [shape: f32[32,384], index: 3, kind: input, shape index: {}]
  %s4 = inlined_call_operand.hbm [shape: f32[384,128], index: 4, kind: input, shape index: {}]
  %s5 = inlined_call_operand.hbm [shape: f32[48,128], index: 5, kind: output, shape index: {}]
  %s6 = sld [smem:[#allocation0]]
  $region69: #{tpu_custom_call.1} parent=0
    _
  %s8 = ssub.s32 1, %s6
  %s9 = scalar_select 0, %s8, %s6
  $region1: #{tpu_custom_call.1} parent=0
    #allocation3 [shape = 'u8[196608]{0}', space=vmem, size = 0x30000, scoped, tag = 'input window, operand 4, single buffered']
    #allocation4 [shape = 's32[2]{0}', space=sflag, size = 0x8, scoped, tag = 'scoped memory for tpu_custom_call.1']
    #allocation5 [shape = 's32[2]{0}', space=sflag, size = 0x8, scoped, tag = 'scoped memory for tpu_custom_call.1']
    #allocation6 [shape = 'u8[24576]{0}', space=vmem, size = 0x6000, scoped, tag = 'output window, operand 0']
    %10 = vsyncpa [#allocation4], 0
    %11 = vsyncpa [#allocation5], 0
    %s12 = scalar_lea.sflag [#allocation5], 1
    %13 = vsyncpa %s12, 0
    loop: start=0, step=1, limit=4
    $region2: #{tpu_custom_call.1} parent=1 // loop_pre_header
      _
    $region3: #{tpu_custom_call.1} parent=1 // loop_header
      %s15 = sphi 0, %s19
      %p16 = scmp.ge.s32.totalorder %s15, 4
      %s22 = sphi 0, %s34
      %s23 = sphi 0, %s30
      %s24 = sphi 0, %s22
      %s25 = sphi 0, %s23
      %s26 = sphi 0, %s24
      %s27 = sphi 0, %s25
      %s37 = sphi 0, %s39
      %s40 = sphi 0, %s37
      %s41 = sphi 0, %s40
      %s57 = sphi 0, %s41
      %s63 = sphi 0, %s65
      %s66 = sphi 0, %s63
      %s67 = sphi 0, %s66
      %s83 = sphi 0, %s67
      %s89 = sphi 0, %s91
      %s92 = sphi 0, %s89
      %s93 = sphi 0, %s92
      %s109 = sphi 0, %s93
      %s115 = sphi 0, %s117
      %s118 = sphi 0, %s115
      %s119 = sphi 0, %s118
      %s135 = sphi 0, %s119
      %s139 = sphi 0, %s139
      %s141 = sphi 0, %s139
      %s142 = sphi 0, %s141
      %s156 = sphi 0, %s142
      %s162 = sphi 0, %s164
      %s165 = sphi 0, %s162
      %s166 = sphi 0, %s165
      %s182 = sphi 0, %s166
    $region4: #{tpu_custom_call.1} parent=1 // loop_header_branch
      %18 = sbr.rel (%p16) target = $region8
    $region5: #{tpu_custom_call.1} parent=1 // loop_body
      %s20 = ssub.s32 %s15, 1
      %s21 = ssub.s32 %s15, 2
      %s28 = sadd.s32 1, %s23
      %p29 = scmp.ge.s32.totalorder %s28, 1
      %s30 = scalar_select %p29, 0, %s28
      %s31 = sadd.s32 1, %s22
      %s32 = scalar_select %p29, %s31, %s22
      %p33 = scmp.ge.s32.totalorder %s32, 2
      %s34 = scalar_select %p33, 0, %s32
      %s35 = ssub.s32 %s22, %s34
      %p36 = scmp.eq.s32.totalorder %s35, 0
      %s38 = sadd.s32 %s37, 1
      %s39 = scalar_select %p36, %s37, %s38
      %p42 = pneg %p36
      %p43 = scmp.eq.s32.totalorder %s15, 1
      %p44 = por %p42, %p43
      %p45 = scmp.ne.s32.totalorder %s37, %s40
      %p46 = scmp.eq.s32.totalorder %s15, 0
      %p47 = por %p45, %p46
      %p48 = scmp.ne.s32.totalorder %s37, %s40
      %p49 = scmp.eq.s32.totalorder %s20, 1
      %p50 = por %p48, %p49
      %p51 = scmp.ne.s32.totalorder %s40, %s41
      %p52 = scmp.eq.s32.totalorder %s20, 0
      %p53 = por %p51, %p52
      %p54 = scmp.ne.s32.totalorder %s40, %s41
      %p55 = scmp.eq.s32.totalorder %s21, 1
      %p56 = por %p54, %p55
      %p58 = scmp.ne.s32.totalorder %s41, %s57
      %p59 = scmp.eq.s32.totalorder %s21, 0
      %p60 = por %p58, %p59
      %s61 = ssub.s32 %s22, %s34
      %p62 = scmp.eq.s32.totalorder %s61, 0
      %s64 = sadd.s32 %s63, 1
      %s65 = scalar_select %p62, %s63, %s64
      %p68 = pneg %p62
      %p69 = scmp.eq.s32.totalorder %s15, 1
      %p70 = por %p68, %p69
      %p71 = scmp.ne.s32.totalorder %s63, %s66
      %p72 = scmp.eq.s32.totalorder %s15, 0
      %p73 = por %p71, %p72
      %p74 = scmp.ne.s32.totalorder %s63, %s66
      %p75 = scmp.eq.s32.totalorder %s20, 1
      %p76 = por %p74, %p75
      %p77 = scmp.ne.s32.totalorder %s66, %s67
      %p78 = scmp.eq.s32.totalorder %s20, 0
      %p79 = por %p77, %p78
      %p80 = scmp.ne.s32.totalorder %s66, %s67
      %p81 = scmp.eq.s32.totalorder %s21, 1
      %p82 = por %p80, %p81
      %p84 = scmp.ne.s32.totalorder %s67, %s83
      %p85 = scmp.eq.s32.totalorder %s21, 0
      %p86 = por %p84, %p85
      %s87 = ssub.s32 %s23, %s30
      %p88 = scmp.eq.s32.totalorder %s87, 0
      %s90 = sadd.s32 %s89, 1
      %s91 = scalar_select %p88, %s89, %s90
      %p94 = pneg %p88
      %p95 = scmp.eq.s32.totalorder %s15, 1
      %p96 = por %p94, %p95
      %p97 = scmp.ne.s32.totalorder %s89, %s92
      %p98 = scmp.eq.s32.totalorder %s15, 0
      %p99 = por %p97, %p98
      %p100 = scmp.ne.s32.totalorder %s89, %s92
      %p101 = scmp.eq.s32.totalorder %s20, 1
      %p102 = por %p100, %p101
      %p103 = scmp.ne.s32.totalorder %s92, %s93
      %p104 = scmp.eq.s32.totalorder %s20, 0
      %p105 = por %p103, %p104
      %p106 = scmp.ne.s32.totalorder %s92, %s93
      %p107 = scmp.eq.s32.totalorder %s21, 1
      %p108 = por %p106, %p107
      %p110 = scmp.ne.s32.totalorder %s93, %s109
      %p111 = scmp.eq.s32.totalorder %s21, 0
      %p112 = por %p110, %p111
      %s113 = ssub.s32 %s23, %s30
      %p114 = scmp.eq.s32.totalorder %s113, 0
      %s116 = sadd.s32 %s115, 1
      %s117 = scalar_select %p114, %s115, %s116
      %p120 = pneg %p114
      %p121 = scmp.eq.s32.totalorder %s15, 1
      %p122 = por %p120, %p121
      %p123 = scmp.ne.s32.totalorder %s115, %s118
      %p124 = scmp.eq.s32.totalorder %s15, 0
      %p125 = por %p123, %p124
      %p126 = scmp.ne.s32.totalorder %s115, %s118
      %p127 = scmp.eq.s32.totalorder %s20, 1
      %p128 = por %p126, %p127
      %p129 = scmp.ne.s32.totalorder %s118, %s119
      %p130 = scmp.eq.s32.totalorder %s20, 0
      %p131 = por %p129, %p130
      %p132 = scmp.ne.s32.totalorder %s118, %s119
      %p133 = scmp.eq.s32.totalorder %s21, 1
      %p134 = por %p132, %p133
      %p136 = scmp.ne.s32.totalorder %s119, %s135
      %p137 = scmp.eq.s32.totalorder %s21, 0
      %p138 = por %p136, %p137
      %s140 = sadd.s32 %s139, 1
      %p143 = scmp.eq.s32.totalorder %s15, 1
      %p144 = scmp.ne.s32.totalorder %s139, %s141
      %p145 = scmp.eq.s32.totalorder %s15, 0
      %p146 = por %p144, %p145
      %p147 = scmp.ne.s32.totalorder %s139, %s141
      %p148 = scmp.eq.s32.totalorder %s20, 1
      %p149 = por %p147, %p148
      %p150 = scmp.ne.s32.totalorder %s141, %s142
      %p151 = scmp.eq.s32.totalorder %s20, 0
      %p152 = por %p150, %p151
      %p153 = scmp.ne.s32.totalorder %s141, %s142
      %p154 = scmp.eq.s32.totalorder %s21, 1
      %p155 = por %p153, %p154
      %p157 = scmp.ne.s32.totalorder %s142, %s156
      %p158 = scmp.eq.s32.totalorder %s21, 0
      %p159 = por %p157, %p158
      %s160 = ssub.s32 %s22, %s34
      %p161 = scmp.eq.s32.totalorder %s160, 0
      %s163 = sadd.s32 %s162, 1
      %s164 = scalar_select %p161, %s162, %s163
      %p167 = pneg %p161
      %p168 = scmp.eq.s32.totalorder %s15, 1
      %p169 = por %p167, %p168
      %p170 = scmp.ne.s32.totalorder %s162, %s165
      %p171 = scmp.eq.s32.totalorder %s15, 0
      %p172 = por %p170, %p171
      %p173 = scmp.ne.s32.totalorder %s162, %s165
      %p174 = scmp.eq.s32.totalorder %s20, 1
      %p175 = por %p173, %p174
      %p176 = scmp.ne.s32.totalorder %s165, %s166
      %p177 = scmp.eq.s32.totalorder %s20, 0
      %p178 = por %p176, %p177
      %p179 = scmp.ne.s32.totalorder %s165, %s166
      %p180 = scmp.eq.s32.totalorder %s21, 1
      %p181 = por %p179, %p180
      %p183 = scmp.ne.s32.totalorder %s166, %s182
      %p184 = scmp.eq.s32.totalorder %s21, 0
      %p185 = por %p183, %p184
      %p186 = scmp.le.s32.totalorder 1, %s15
      %p187 = scmp.lt.s32.totalorder %s15, 3
      %p188 = pnand %p186, %p187
      %p189 = pneg %p188
      // Predicated region
      $region9: #{tpu_custom_call.1} parent=5 // pred_check
        _
      $region10: #{tpu_custom_call.1} parent=5 // pred_check_branch
        %191 = sbr.rel (%p188) target = $region12
      $region11: #{tpu_custom_call.1} parent=5 // pred_region
        %s192 = ssub.s32 %s15, 1
        // Predicated region
        $region13: #{tpu_custom_call.1} parent=11 // pred_check
          %p193 = pneg %p105
        $region14: #{tpu_custom_call.1} parent=11 // pred_check_branch
          %195 = sbr.rel (%p193) target = $region16
        $region15: #{tpu_custom_call.1} parent=11 // pred_region
          %s196 = smul.u32 3, %s25
          %p197 = scmp.lt.s32.totalorder %s196, 2
          %s198 = scalar_select %p197, %s196, 2
          %s199 = scalar_lea.vmem %s2, %s198
          %s200 = smul.u32 3, %s25
        $region16: #{tpu_custom_call.1} parent=11 // pred_fallthru
          _
        // Predicated region
        $region17: #{tpu_custom_call.1} parent=11 // pred_check
          %p201 = pneg %p131
        $region18: #{tpu_custom_call.1} parent=11 // pred_check_branch
          %203 = sbr.rel (%p201) target = $region20
        $region19: #{tpu_custom_call.1} parent=11 // pred_region
          %s204 = smul.u32 3, %s25
          %p205 = scmp.lt.s32.totalorder %s204, 2
          %s206 = scalar_select %p205, %s204, 2
          %s207 = smul.addr %s206, 8
          %s208 = scalar_lea.vmem %s3, %s207
          %s209 = smul.u32 3, %s25
        $region20: #{tpu_custom_call.1} parent=11 // pred_fallthru
          _
        // Predicated region
        $region21: #{tpu_custom_call.1} parent=11 // pred_check
          %p210 = pneg %p152
        $region22: #{tpu_custom_call.1} parent=11 // pred_check_branch
          %212 = sbr.rel (%p210) target = $region24
        $region23: #{tpu_custom_call.1} parent=11 // pred_region
          %s214 = ssub.s32 6144, 6144
          %215 = vsyncadd [#allocation4], %s214
          %s216 = sshll.u32 [#allocation3], 4
          %s217 = int_to_ptr.vmem [resolvable:$true] %s216
          %222 = dma.hbm_to_vmem [thread:$0]  %s4, 6144, %s217, [#allocation4], 128, 128, 8
        $region24: #{tpu_custom_call.1} parent=11 // pred_fallthru
          _
      $region12: #{tpu_custom_call.1} parent=5 // pred_fallthru
        _
      %p223 = scmp.lt.s32.totalorder %s15, 2
      // Predicated region
      $region25: #{tpu_custom_call.1} parent=5 // pred_check
        %p224 = pneg %p223
      $region26: #{tpu_custom_call.1} parent=5 // pred_check_branch
        %226 = sbr.rel (%p224) target = $region28
      $region27: #{tpu_custom_call.1} parent=5 // pred_region
        // Predicated region
        $region29: #{tpu_custom_call.1} parent=27 // pred_check
          %p227 = pneg %p47
        $region30: #{tpu_custom_call.1} parent=27 // pred_check_branch
          %229 = sbr.rel (%p227) target = $region32
        $region31: #{tpu_custom_call.1} parent=27 // pred_region
          %s230 = smul.u32 3, %s22
          %p231 = scmp.lt.s32.totalorder %s230, 5
          %s232 = scalar_select %p231, %s230, 5
          %s233 = smul.addr %s232, 8
          %s234 = scalar_lea.vmem %s0, %s233
          %s235 = smul.u32 3, %s22
        $region32: #{tpu_custom_call.1} parent=27 // pred_fallthru
          _
        // Predicated region
        $region33: #{tpu_custom_call.1} parent=27 // pred_check
          %p236 = pneg %p73
        $region34: #{tpu_custom_call.1} parent=27 // pred_check_branch
          %238 = sbr.rel (%p236) target = $region36
        $region35: #{tpu_custom_call.1} parent=27 // pred_region
          %s239 = smul.u32 3, %s22
          %p240 = scmp.lt.s32.totalorder %s239, 5
          %s241 = scalar_select %p240, %s239, 5
          %s242 = smul.addr %s241, 8
          %s243 = scalar_lea.vmem %s1, %s242
          %s244 = smul.u32 3, %s22
        $region36: #{tpu_custom_call.1} parent=27 // pred_fallthru
          _
      $region28: #{tpu_custom_call.1} parent=5 // pred_fallthru
        _
      %p245 = scmp.le.s32.totalorder 1, %s15
      %p246 = scmp.lt.s32.totalorder %s15, 3
      %p247 = pnand %p245, %p246
      %p248 = pneg %p247
      // Predicated region
      $region37: #{tpu_custom_call.1} parent=5 // pred_check
        _
      $region38: #{tpu_custom_call.1} parent=5 // pred_check_branch
        %250 = sbr.rel (%p247) target = $region40
      $region39: #{tpu_custom_call.1} parent=5 // pred_region
        %s251 = ssub.s32 %s15, 1
        // Predicated region
        $region41: #{tpu_custom_call.1} parent=39 // pred_check
          %p252 = pneg %p152
        $region42: #{tpu_custom_call.1} parent=39 // pred_check_branch
          %254 = sbr.rel (%p252) target = $region44
        $region43: #{tpu_custom_call.1} parent=39 // pred_region
          %255 = dma.done [#allocation4], 6144
        $region44: #{tpu_custom_call.1} parent=39 // pred_fallthru
          _
        %s256 = smul.u32 3, %s24
        %p257 = scmp.lt.s32.totalorder %s256, 5
        %s258 = scalar_select %p257, %s256, 5
        %s259 = smul.addr %s258, 8
        %s260 = scalar_lea.vmem %s0, %s259
        %p261 = pneg %p53
        %p262 = pneg %p50
        %s263 = smul.u32 3, %s24
        %p264 = scmp.lt.s32.totalorder %s263, 5
        %s265 = scalar_select %p264, %s263, 5
        %s266 = smul.addr %s265, 8
        %s267 = scalar_lea.vmem %s1, %s266
        %p268 = pneg %p79
        %p269 = pneg %p76
        %s270 = smul.u32 3, %s25
        %p271 = scmp.lt.s32.totalorder %s270, 2
        %s272 = scalar_select %p271, %s270, 2
        %s273 = scalar_lea.vmem %s2, %s272
        %p274 = pneg %p105
        %p275 = pneg %p102
        %s276 = smul.u32 3, %s25
        %p277 = scmp.lt.s32.totalorder %s276, 2
        %s278 = scalar_select %p277, %s276, 2
        %s279 = smul.addr %s278, 8
        %s280 = scalar_lea.vmem %s3, %s279
        %p281 = pneg %p131
        %p282 = pneg %p128
        %p283 = pneg %p152
        %p284 = pneg %p149
        %p285 = pneg %p178
        %p286 = pneg %p175
        %s287 = sand.u32 %s165, 1
        %s288 = scalar_lea.sflag [#allocation5], %s287
        %s289 = sand.u32 %s165, 1
        %s290 = smul.addr %s289, 24
        %s291 = scalar_lea.vmem [#allocation6], %s290
        %s292 = smul.u32 3, %s24
        %p293 = scmp.lt.s32.totalorder %s292, 5
        %s294 = scalar_select %p293, %s292, 5
        %s295 = smul.addr %s294, 8
        %s296 = scalar_lea.vmem %s0, %s295
        %s297 = smul.u32 3, %s24
        %s298 = smul.u32 3, %s24
        %p299 = scmp.lt.s32.totalorder %s298, 5
        %s300 = scalar_select %p299, %s298, 5
        %s301 = smul.addr %s300, 8
        %s302 = scalar_lea.vmem %s1, %s301
        %s303 = smul.u32 3, %s24
        %s304 = smul.u32 3, %s25
        %p305 = scmp.lt.s32.totalorder %s304, 2
        %s306 = scalar_select %p305, %s304, 2
        %s307 = scalar_lea.vmem %s2, %s306
        %s308 = smul.u32 3, %s25
        %s309 = smul.u32 3, %s25
        %p310 = scmp.lt.s32.totalorder %s309, 2
        %s311 = scalar_select %p310, %s309, 2
        %s312 = smul.addr %s311, 8
        %s313 = scalar_lea.vmem %s3, %s312
        %s314 = smul.u32 3, %s25
        %s315 = smul.u32 3, %s24
        %v316 = vld [vmem:[%s302] sm:$0xff]
        %v317 = vld [vmem:[%s302 + $0x8] sm:$0xff]
        %v318 = vld [vmem:[%s302 + $0x10] sm:$0xff]
        %v319 = vld [vmem:[%s313] sm:$0xff]
        %v320 = vld [vmem:[%s313 + $0x8] sm:$0xff]
        %v321 = vld [vmem:[%s313 + $0x10] sm:$0xff]
        %v322 = vld [vmem:[%s313 + $0x18] sm:$0xff]
        %v323 = vld [vmem:[%s313 + $0x20] sm:$0xff]
        %v324 = vld [vmem:[%s313 + $0x28] sm:$0xff]
        %v325 = vld [vmem:[%s313 + $0x30] sm:$0xff]
        %v326 = vld [vmem:[%s313 + $0x38] sm:$0xff]
        %v327 = vld [vmem:[%s313 + $0x40] sm:$0xff]
        %v328 = vld [vmem:[%s313 + $0x48] sm:$0xff]
        %v329 = vld [vmem:[%s313 + $0x50] sm:$0xff]
        %v330 = vld [vmem:[%s313 + $0x58] sm:$0xff]
        %vm331 = vcmask 261120
        %v333 = vsel %vm331, %v316, 0
        %v336 = vsel %vm331, %v317, 0
        %v339 = vsel %vm331, %v318, 0
        %341 = vmatprep.subr.mxu0 %v320
        %342 = vmatpush1.msra.mxu0 %v319
        %343 = vmatprep.subr.mxu0 %v323
        %344 = vmatpush1.msra.mxu0 %v322
        %345 = vmatprep.subr.mxu0 %v326
        %346 = vmatpush1.msra.mxu0 %v325
        %347 = vmatprep.subr.mxu0 %v329
        %348 = vmatpush1.msra.mxu0 %v328
        %349 = vmatprep.subr.mxu0 0.0
        %350 = vmatpush1.msra.mxu0 0.0
        %351 = vmatprep.subr.mxu0 0.0
        %352 = vmatpush1.msra.mxu0 0.0
        %353 = vmatprep.subr.mxu0 0.0
        %354 = vmatpush1.msra.mxu0 0.0
        %355 = vmatprep.subr.mxu0 0.0
        %356 = vmatpush1.msra.mxu0 0.0
        %357 = vmatprep.subr.mxu0 0.0
        %358 = vmatpush1.msra.mxu0 0.0
        %359 = vmatprep.subr.mxu0 0.0
        %360 = vmatpush1.msra.mxu0 0.0
        %361 = vmatprep.subr.mxu0 0.0
        %362 = vmatpush1.msra.mxu0 0.0
        %363 = vmatprep.subr.mxu0 0.0
        %364 = vmatpush1.msra.mxu0 0.0
        %365 = vmatprep.subr.mxu0 0.0
        %366 = vmatpush1.msra.mxu0 0.0
        %367 = vmatprep.subr.mxu0 0.0
        %368 = vmatpush1.msra.mxu0 0.0
        %369 = vmatprep.subr.mxu0 0.0
        %370 = vmatpush1.msra.mxu0 0.0
        %371 = vmatprep.subr.mxu0 0.0
        %372 = vmatpush1.msra.mxu0 0.0
        %373 = vmatprep.subr.mxu0 0.0
        %374 = vmatpush1.msra.mxu0 0.0
        %375 = vmatprep.subr.mxu0 0.0
        %376 = vmatpush1.msra.mxu0 0.0
        %377 = vmatprep.subr.mxu0 0.0
        %378 = vmatpush1.msra.mxu0 0.0
        %379 = vmatprep.subr.mxu0 0.0
        %380 = vmatpush1.msra.mxu0 0.0
        %381 = vmatprep.subr.mxu0 0.0
        %382 = vmatpush1.msra.mxu0 0.0
        %383 = vmatprep.subr.mxu0 0.0
        %384 = vmatpush1.msra.mxu0 0.0
        %385 = vmatprep.subr.mxu0 0.0
        %386 = vmatpush1.msra.mxu0 0.0
        %387 = vmatprep.subr.mxu0 0.0
        %388 = vmatpush1.msra.mxu0 0.0
        %389 = vmatprep.subr.mxu0 0.0
        %390 = vmatpush1.msra.mxu0 0.0
        %391 = vmatprep.subr.mxu0 0.0
        %392 = vmatpush1.msra.mxu0 0.0
        %393 = vmatprep.subr.mxu0 0.0
        %394 = vmatpush1.msra.mxu0 0.0
        %395 = vmatprep.subr.mxu0 0.0
        %396 = vmatpush1.msra.mxu0 0.0
        %397 = vmatprep.subr.mxu0 0.0
        %398 = vmatpush1.msra.mxu0 0.0
        %399 = vmatprep.subr.mxu0 0.0
        %400 = vmatpush1.msra.mxu0 0.0
        %401 = vmatprep.subr.mxu0 0.0
        %402 = vmatpush1.msra.mxu0 0.0
        %403 = vmatprep.subr.mxu0 0.0
        %404 = vmatpush1.msra.mxu0 0.0
        %405 = vmatprep.mubr.f32.mxu0 0.0
        %406 = vmatmul.mubr.f32.gmra.mrb[0].mxu0 %v333
        %v407 = vpop.f32.mrb[0].mxu0
        %v408 = vadd.f32 0.0, %v407
        %v409 = vpop.f32.mrb[0].mxu0
        %v410 = vadd.f32 0.0, %v409
        %411 = vmatprep.mubr.f32.mxu0 0.0
        %412 = vmatmul.mubr.f32.gmra.mrb[0].mxu0 %v336
        %v413 = vpop.f32.mrb[0].mxu0
        %v414 = vadd.f32 0.0, %v413
        %v415 = vpop.f32.mrb[0].mxu0
        %v416 = vadd.f32 0.0, %v415
        %417 = vmatprep.mubr.f32.mxu0 0.0
        %418 = vmatmul.mubr.f32.gmra.mrb[0].mxu0 %v339
        %v419 = vpop.f32.mrb[0].mxu0
        %v420 = vadd.f32 0.0, %v419
        %v421 = vpop.f32.mrb[0].mxu0
        %v422 = vadd.f32 0.0, %v421
        %423 = vdwg.mxu0
        %424 = vmatprep.subr.mxu0 0.0
        %425 = vmatpush1.msra.mxu0 %v321
        %426 = vmatprep.subr.mxu0 0.0
        %427 = vmatpush1.msra.mxu0 %v324
        %428 = vmatprep.subr.mxu0 0.0
        %429 = vmatpush1.msra.mxu0 %v327
        %430 = vmatprep.subr.mxu0 0.0
        %431 = vmatpush1.msra.mxu0 %v330
        %432 = vmatprep.subr.mxu0 0.0
        %433 = vmatpush1.msra.mxu0 0.0
        %434 = vmatprep.subr.mxu0 0.0
        %435 = vmatpush1.msra.mxu0 0.0
        %436 = vmatprep.subr.mxu0 0.0
        %437 = vmatpush1.msra.mxu0 0.0
        %438 = vmatprep.subr.mxu0 0.0
        %439 = vmatpush1.msra.mxu0 0.0
        %440 = vmatprep.subr.mxu0 0.0
        %441 = vmatpush1.msra.mxu0 0.0
        %442 = vmatprep.subr.mxu0 0.0
        %443 = vmatpush1.msra.mxu0 0.0
        %444 = vmatprep.subr.mxu0 0.0
        %445 = vmatpush1.msra.mxu0 0.0
        %446 = vmatprep.subr.mxu0 0.0
        %447 = vmatpush1.msra.mxu0 0.0
        %448 = vmatprep.subr.mxu0 0.0
        %449 = vmatpush1.msra.mxu0 0.0
        %450 = vmatprep.subr.mxu0 0.0
        %451 = vmatpush1.msra.mxu0 0.0
        %452 = vmatprep.subr.mxu0 0.0
        %453 = vmatpush1.msra.mxu0 0.0
        %454 = vmatprep.subr.mxu0 0.0
        %455 = vmatpush1.msra.mxu0 0.0
        %456 = vmatprep.subr.mxu0 0.0
        %457 = vmatpush1.msra.mxu0 0.0
        %458 = vmatprep.subr.mxu0 0.0
        %459 = vmatpush1.msra.mxu0 0.0
        %460 = vmatprep.subr.mxu0 0.0
        %461 = vmatpush1.msra.mxu0 0.0
        %462 = vmatprep.subr.mxu0 0.0
        %463 = vmatpush1.msra.mxu0 0.0
        %464 = vmatprep.subr.mxu0 0.0
        %465 = vmatpush1.msra.mxu0 0.0
        %466 = vmatprep.subr.mxu0 0.0
        %467 = vmatpush1.msra.mxu0 0.0
        %468 = vmatprep.subr.mxu0 0.0
        %469 = vmatpush1.msra.mxu0 0.0
        %470 = vmatprep.subr.mxu0 0.0
        %471 = vmatpush1.msra.mxu0 0.0
        %472 = vmatprep.subr.mxu0 0.0
        %473 = vmatpush1.msra.mxu0 0.0
        %474 = vmatprep.subr.mxu0 0.0
        %475 = vmatpush1.msra.mxu0 0.0
        %476 = vmatprep.subr.mxu0 0.0
        %477 = vmatpush1.msra.mxu0 0.0
        %478 = vmatprep.subr.mxu0 0.0
        %479 = vmatpush1.msra.mxu0 0.0
        %480 = vmatprep.subr.mxu0 0.0
        %481 = vmatpush1.msra.mxu0 0.0
        %482 = vmatprep.subr.mxu0 0.0
        %483 = vmatpush1.msra.mxu0 0.0
        %484 = vmatprep.subr.mxu0 0.0
        %485 = vmatpush1.msra.mxu0 0.0
        %486 = vmatprep.subr.mxu0 0.0
        %487 = vmatpush1.msra.mxu0 0.0
        %488 = vmatprep.mubr.f32.mxu0 0.0
        %489 = vmatmul.mubr.f32.gmra.mrb[0].mxu0 %v333
        %v490 = vpop.f32.mrb[0].mxu0
        %v491 = vadd.f32 0.0, %v490
        %v492 = vpop.f32.mrb[0].mxu0
        %493 = vmatprep.mubr.f32.mxu0 0.0
        %494 = vmatmul.mubr.f32.gmra.mrb[0].mxu0 %v336
        %v495 = vpop.f32.mrb[0].mxu0
        %v496 = vadd.f32 0.0, %v495
        %v497 = vpop.f32.mrb[0].mxu0
        %498 = vmatprep.mubr.f32.mxu0 0.0
        %499 = vmatmul.mubr.f32.gmra.mrb[0].mxu0 %v339
        %v500 = vpop.f32.mrb[0].mxu0
        %v501 = vadd.f32 0.0, %v500
        %v502 = vpop.f32.mrb[0].mxu0
        %503 = vdwg.mxu0
        %v504 = vld [vmem:[%s296] sm:$0xff]
        %v505 = vld [vmem:[%s296 + $0x8] sm:$0xff]
        %v506 = vld [vmem:[%s296 + $0x10] sm:$0xff]
        %v507 = vld [vmem:[%s307] sm:$0x7]
        %509 = vset.pattern.permute.xlu0 0
        %510 = vperm.xlu0 %509, %v504
        %v511 = vpop.permute.xlu0 %510
        %514 = vset.pattern.permute.xlu0 0
        %515 = vperm.xlu0 %514, %v505
        %v516 = vpop.permute.xlu0 %515
        %519 = vset.pattern.permute.xlu0 0
        %520 = vperm.xlu0 %519, %v506
        %v521 = vpop.permute.xlu0 %520
        %v524 = vlaneseq
        %v525 = vshrl.u32 %v524, 7
        %v526 = vsub.s32 0, %v525
        %v527 = vrot.slane %v507, %v526
        %v528 = vlaneseq
        %v529 = vshrl.u32 %v528, 7
        %v530 = vsub.s32 1, %v529
        %v531 = vrot.slane %v507, %v530
        %v532 = vlaneseq
        %v533 = vshrl.u32 %v532, 7
        %v534 = vsub.s32 2, %v533
        %v535 = vrot.slane %v507, %v534
        %v539 = vadd.f32 %v511, %v527
        %v540 = vadd.f32 %v511, %v531
        %v541 = vadd.f32 %v511, %v535
        %v542 = vadd.f32 %v516, %v527
        %v543 = vadd.f32 %v516, %v531
        %v544 = vadd.f32 %v516, %v535
        %v545 = vadd.f32 %v521, %v527
        %v546 = vadd.f32 %v521, %v531
        %v547 = vadd.f32 %v521, %v535
        %v548 = vmul.f32 %v408, 2.0
        %v549 = vmul.f32 %v410, 2.0
        %v550 = vmul.f32 %v491, 2.0
        %v551 = vmul.f32 %v414, 2.0
        %v552 = vmul.f32 %v416, 2.0
        %v553 = vmul.f32 %v496, 2.0
        %v554 = vmul.f32 %v420, 2.0
        %v555 = vmul.f32 %v422, 2.0
        %v556 = vmul.f32 %v501, 2.0
        %v557 = vsub.f32 %v539, %v548
        %v558 = vsub.f32 %v540, %v549
        %v559 = vsub.f32 %v541, %v550
        %v560 = vsub.f32 %v542, %v551
        %v561 = vsub.f32 %v543, %v552
        %v562 = vsub.f32 %v544, %v553
        %v563 = vsub.f32 %v545, %v554
        %v564 = vsub.f32 %v546, %v555
        %v565 = vsub.f32 %v547, %v556
        %v566 = vmax.f32 %v557, 0.0
        %v567 = vmax.f32 %v558, 0.0
        %v568 = vmax.f32 %v559, 0.0
        %v569 = vmax.f32 %v560, 0.0
        %v570 = vmax.f32 %v561, 0.0
        %v571 = vmax.f32 %v562, 0.0
        %v572 = vmax.f32 %v563, 0.0
        %v573 = vmax.f32 %v564, 0.0
        %v574 = vmax.f32 %v565, 0.0
        %v575 = vmul.f32 %v566, -0.02
        %v576 = vmul.f32 %v567, -0.02
        %v577 = vmul.f32 %v568, -0.02
        %v578 = vmul.f32 %v569, -0.02
        %v579 = vmul.f32 %v570, -0.02
        %v580 = vmul.f32 %v571, -0.02
        %v581 = vmul.f32 %v572, -0.02
        %v582 = vmul.f32 %v573, -0.02
        %v583 = vmul.f32 %v574, -0.02
        %v584 = vmul.f32 %v575, 1.442695
        %v585 = vpow.pop %v584
        %v586 = vmul.f32 %v576, 1.442695
        %v587 = vpow.pop %v586
        %v588 = vmul.f32 %v577, 1.442695
        %v589 = vpow.pop %v588
        %v590 = vmul.f32 %v578, 1.442695
        %v591 = vpow.pop %v590
        %v592 = vmul.f32 %v579, 1.442695
        %v593 = vpow.pop %v592
        %v594 = vmul.f32 %v580, 1.442695
        %v595 = vpow.pop %v594
        %v596 = vmul.f32 %v581, 1.442695
        %v597 = vpow.pop %v596
        %v598 = vmul.f32 %v582, 1.442695
        %v599 = vpow.pop %v598
        %v600 = vmul.f32 %v583, 1.442695
        %v601 = vpow.pop %v600
        %s602 = smul.u32 %s25, 384
        %s603 = scalar_lea.vmem [#allocation3], %s602
        %v604 = vld [vmem:[%s603] sm:$0xff]
        %v605 = vld [vmem:[%s603 + $0x8] sm:$0xff]
        %v606 = vld [vmem:[%s603 + $0x10] sm:$0xff]
        %v607 = vld [vmem:[%s603 + $0x18] sm:$0xff]
        %v608 = vld [vmem:[%s603 + $0x20] sm:$0xff]
        %v609 = vld [vmem:[%s603 + $0x28] sm:$0xff]
        %v610 = vld [vmem:[%s603 + $0x30] sm:$0xff]
        %v611 = vld [vmem:[%s603 + $0x38] sm:$0xff]
        %v612 = vld [vmem:[%s603 + $0x40] sm:$0xff]
        %v613 = vld [vmem:[%s603 + $0x48] sm:$0xff]
        %v614 = vld [vmem:[%s603 + $0x50] sm:$0xff]
        %v615 = vld [vmem:[%s603 + $0x58] sm:$0xff]
        %v616 = vld [vmem:[%s603 + $0x60] sm:$0xff]
        %v617 = vld [vmem:[%s603 + $0x68] sm:$0xff]
        %v618 = vld [vmem:[%s603 + $0x70] sm:$0xff]
        %v619 = vld [vmem:[%s603 + $0x78] sm:$0xff]
        %v620 = vld [vmem:[%s603 + $0x80] sm:$0xff]
        %v621 = vld [vmem:[%s603 + $0x88] sm:$0xff]
        %v622 = vld [vmem:[%s603 + $0x90] sm:$0xff]
        %v623 = vld [vmem:[%s603 + $0x98] sm:$0xff]
        %v624 = vld [vmem:[%s603 + $0xa0] sm:$0xff]
        %v625 = vld [vmem:[%s603 + $0xa8] sm:$0xff]
        %v626 = vld [vmem:[%s603 + $0xb0] sm:$0xff]
        %v627 = vld [vmem:[%s603 + $0xb8] sm:$0xff]
        %v628 = vld [vmem:[%s603 + $0xc0] sm:$0xff]
        %v629 = vld [vmem:[%s603 + $0xc8] sm:$0xff]
        %v630 = vld [vmem:[%s603 + $0xd0] sm:$0xff]
        %v631 = vld [vmem:[%s603 + $0xd8] sm:$0xff]
        %v632 = vld [vmem:[%s603 + $0xe0] sm:$0xff]
        %v633 = vld [vmem:[%s603 + $0xe8] sm:$0xff]
        %v634 = vld [vmem:[%s603 + $0xf0] sm:$0xff]
        %v635 = vld [vmem:[%s603 + $0xf8] sm:$0xff]
        %v636 = vld [vmem:[%s603 + $0x100] sm:$0xff]
        %v637 = vld [vmem:[%s603 + $0x108] sm:$0xff]
        %v638 = vld [vmem:[%s603 + $0x110] sm:$0xff]
        %v639 = vld [vmem:[%s603 + $0x118] sm:$0xff]
        %v640 = vld [vmem:[%s603 + $0x120] sm:$0xff]
        %v641 = vld [vmem:[%s603 + $0x128] sm:$0xff]
        %v642 = vld [vmem:[%s603 + $0x130] sm:$0xff]
        %v643 = vld [vmem:[%s603 + $0x138] sm:$0xff]
        %v644 = vld [vmem:[%s603 + $0x140] sm:$0xff]
        %v645 = vld [vmem:[%s603 + $0x148] sm:$0xff]
        %v646 = vld [vmem:[%s603 + $0x150] sm:$0xff]
        %v647 = vld [vmem:[%s603 + $0x158] sm:$0xff]
        %v648 = vld [vmem:[%s603 + $0x160] sm:$0xff]
        %v649 = vld [vmem:[%s603 + $0x168] sm:$0xff]
        %v650 = vld [vmem:[%s603 + $0x170] sm:$0xff]
        %v651 = vld [vmem:[%s603 + $0x178] sm:$0xff]
        %652 = vmatprep.subr.mxu0 0.0
        %653 = vmatpush1.msra.mxu0 %v604
        %654 = vmatprep.subr.mxu0 0.0
        %655 = vmatpush1.msra.mxu0 %v605
        %656 = vmatprep.subr.mxu0 0.0
        %657 = vmatpush1.msra.mxu0 %v606
        %658 = vmatprep.subr.mxu0 0.0
        %659 = vmatpush1.msra.mxu0 %v607
        %660 = vmatprep.subr.mxu0 0.0
        %661 = vmatpush1.msra.mxu0 %v608
        %662 = vmatprep.subr.mxu0 0.0
        %663 = vmatpush1.msra.mxu0 %v609
        %664 = vmatprep.subr.mxu0 0.0
        %665 = vmatpush1.msra.mxu0 %v610
        %666 = vmatprep.subr.mxu0 0.0
        %667 = vmatpush1.msra.mxu0 %v611
        %668 = vmatprep.subr.mxu0 0.0
        %669 = vmatpush1.msra.mxu0 %v612
        %670 = vmatprep.subr.mxu0 0.0
        %671 = vmatpush1.msra.mxu0 %v613
        %672 = vmatprep.subr.mxu0 0.0
        %673 = vmatpush1.msra.mxu0 %v614
        %674 = vmatprep.subr.mxu0 0.0
        %675 = vmatpush1.msra.mxu0 %v615
        %676 = vmatprep.subr.mxu0 0.0
        %677 = vmatpush1.msra.mxu0 %v616
        %678 = vmatprep.subr.mxu0 0.0
        %679 = vmatpush1.msra.mxu0 %v617
        %680 = vmatprep.subr.mxu0 0.0
        %681 = vmatpush1.msra.mxu0 %v618
        %682 = vmatprep.subr.mxu0 0.0
        %683 = vmatpush1.msra.mxu0 %v619
        %684 = vmatprep.subr.mxu0 0.0
        %685 = vmatpush1.msra.mxu0 %v620
        %686 = vmatprep.subr.mxu0 0.0
        %687 = vmatpush1.msra.mxu0 %v621
        %688 = vmatprep.subr.mxu0 0.0
        %689 = vmatpush1.msra.mxu0 %v622
        %690 = vmatprep.subr.mxu0 0.0
        %691 = vmatpush1.msra.mxu0 %v623
        %692 = vmatprep.subr.mxu0 0.0
        %693 = vmatpush1.msra.mxu0 %v624
        %694 = vmatprep.subr.mxu0 0.0
        %695 = vmatpush1.msra.mxu0 %v625
        %696 = vmatprep.subr.mxu0 0.0
        %697 = vmatpush1.msra.mxu0 %v626
        %698 = vmatprep.subr.mxu0 0.0
        %699 = vmatpush1.msra.mxu0 %v627
        %700 = vmatprep.subr.mxu0 0.0
        %701 = vmatpush1.msra.mxu0 %v628
        %702 = vmatprep.subr.mxu0 0.0
        %703 = vmatpush1.msra.mxu0 %v629
        %704 = vmatprep.subr.mxu0 0.0
        %705 = vmatpush1.msra.mxu0 %v630
        %706 = vmatprep.subr.mxu0 0.0
        %707 = vmatpush1.msra.mxu0 %v631
        %708 = vmatprep.subr.mxu0 0.0
        %709 = vmatpush1.msra.mxu0 %v632
        %710 = vmatprep.subr.mxu0 0.0
        %711 = vmatpush1.msra.mxu0 %v633
        %712 = vmatprep.subr.mxu0 0.0
        %713 = vmatpush1.msra.mxu0 %v634
        %714 = vmatprep.subr.mxu0 0.0
        %715 = vmatpush1.msra.mxu0 %v635
        %716 = vmatprep.mubr.f32.mxu0 %v587
        %717 = vmatmul.mubr.f32.gmra.mrb[0].mxu0 %v585
        %v718 = vpop.f32.mrb[0].mxu0
        %v719 = vadd.f32 0.0, %v718
        %v720 = vpop.f32.mrb[0].mxu0
        %721 = vmatprep.mubr.f32.mxu0 %v593
        %722 = vmatmul.mubr.f32.gmra.mrb[0].mxu0 %v591
        %v723 = vpop.f32.mrb[0].mxu0
        %v724 = vadd.f32 0.0, %v723
        %v725 = vpop.f32.mrb[0].mxu0
        %726 = vmatprep.mubr.f32.mxu0 %v599
        %727 = vmatmul.mubr.f32.gmra.mrb[0].mxu0 %v597
        %v728 = vpop.f32.mrb[0].mxu0
        %v729 = vadd.f32 0.0, %v728
        %v730 = vpop.f32.mrb[0].mxu0
        %731 = vdwg.mxu0
        %732 = vmatprep.subr.mxu0 0.0
        %733 = vmatpush1.msra.mxu0 %v636
        %734 = vmatprep.subr.mxu0 0.0
        %735 = vmatpush1.msra.mxu0 %v637
        %736 = vmatprep.subr.mxu0 0.0
        %737 = vmatpush1.msra.mxu0 %v638
        %738 = vmatprep.subr.mxu0 0.0
        %739 = vmatpush1.msra.mxu0 %v639
        %740 = vmatprep.subr.mxu0 0.0
        %741 = vmatpush1.msra.mxu0 %v640
        %742 = vmatprep.subr.mxu0 0.0
        %743 = vmatpush1.msra.mxu0 %v641
        %744 = vmatprep.subr.mxu0 0.0
        %745 = vmatpush1.msra.mxu0 %v642
        %746 = vmatprep.subr.mxu0 0.0
        %747 = vmatpush1.msra.mxu0 %v643
        %748 = vmatprep.subr.mxu0 0.0
        %749 = vmatpush1.msra.mxu0 %v644
        %750 = vmatprep.subr.mxu0 0.0
        %751 = vmatpush1.msra.mxu0 %v645
        %752 = vmatprep.subr.mxu0 0.0
        %753 = vmatpush1.msra.mxu0 %v646
        %754 = vmatprep.subr.mxu0 0.0
        %755 = vmatpush1.msra.mxu0 %v647
        %756 = vmatprep.subr.mxu0 0.0
        %757 = vmatpush1.msra.mxu0 %v648
        %758 = vmatprep.subr.mxu0 0.0
        %759 = vmatpush1.msra.mxu0 %v649
        %760 = vmatprep.subr.mxu0 0.0
        %761 = vmatpush1.msra.mxu0 %v650
        %762 = vmatprep.subr.mxu0 0.0
        %763 = vmatpush1.msra.mxu0 %v651
        %764 = vmatprep.subr.mxu0 0.0
        %765 = vmatpush1.msra.mxu0 0.0
        %766 = vmatprep.subr.mxu0 0.0
        %767 = vmatpush1.msra.mxu0 0.0
        %768 = vmatprep.subr.mxu0 0.0
        %769 = vmatpush1.msra.mxu0 0.0
        %770 = vmatprep.subr.mxu0 0.0
        %771 = vmatpush1.msra.mxu0 0.0
        %772 = vmatprep.subr.mxu0 0.0
        %773 = vmatpush1.msra.mxu0 0.0
        %774 = vmatprep.subr.mxu0 0.0
        %775 = vmatpush1.msra.mxu0 0.0
        %776 = vmatprep.subr.mxu0 0.0
        %777 = vmatpush1.msra.mxu0 0.0
        %778 = vmatprep.subr.mxu0 0.0
        %779 = vmatpush1.msra.mxu0 0.0
        %780 = vmatprep.subr.mxu0 0.0
        %781 = vmatpush1.msra.mxu0 0.0
        %782 = vmatprep.subr.mxu0 0.0
        %783 = vmatpush1.msra.mxu0 0.0
        %784 = vmatprep.subr.mxu0 0.0
        %785 = vmatpush1.msra.mxu0 0.0
        %786 = vmatprep.subr.mxu0 0.0
        %787 = vmatpush1.msra.mxu0 0.0
        %788 = vmatprep.subr.mxu0 0.0
        %789 = vmatpush1.msra.mxu0 0.0
        %790 = vmatprep.subr.mxu0 0.0
        %791 = vmatpush1.msra.mxu0 0.0
        %792 = vmatprep.subr.mxu0 0.0
        %793 = vmatpush1.msra.mxu0 0.0
        %794 = vmatprep.subr.mxu0 0.0
        %795 = vmatpush1.msra.mxu0 0.0
        %796 = vmatprep.mubr.f32.mxu0 0.0
        %797 = vmatmul.mubr.f32.gmra.mrb[0].mxu0 %v589
        %v798 = vpop.f32.mrb[0].mxu0
        %v799 = vadd.f32 %v719, %v798
        %v800 = vpop.f32.mrb[0].mxu0
        %801 = vmatprep.mubr.f32.mxu0 0.0
        %802 = vmatmul.mubr.f32.gmra.mrb[0].mxu0 %v595
        %v803 = vpop.f32.mrb[0].mxu0
        %v804 = vadd.f32 %v724, %v803
        %v805 = vpop.f32.mrb[0].mxu0
        %806 = vmatprep.mubr.f32.mxu0 0.0
        %807 = vmatmul.mubr.f32.gmra.mrb[0].mxu0 %v601
        %v808 = vpop.f32.mrb[0].mxu0
        %v809 = vadd.f32 %v729, %v808
        %v810 = vpop.f32.mrb[0].mxu0
        %811 = vdwg.mxu0
        %p812 = scmp.eq.s32.totalorder %s25, 0
        // Predicated region
        $region45: #{tpu_custom_call.1} parent=39 // pred_check
          %p813 = pneg %p812
        $region46: #{tpu_custom_call.1} parent=39 // pred_check_branch
          %815 = sbr.rel (%p813) target = $region48
        $region47: #{tpu_custom_call.1} parent=39 // pred_region
          %816 = vst [vmem:[#allocation2] sm:$0xff] %v799
          %817 = vst [vmem:[#allocation2 + $0x8] sm:$0xff] %v804
          %818 = vst [vmem:[#allocation2 + $0x10] sm:$0xff] %v809
        $region48: #{tpu_custom_call.1} parent=39 // pred_fallthru
          _
        %p819 = scmp.ne.s32.totalorder %s25, 0
        // Predicated region
        $region49: #{tpu_custom_call.1} parent=39 // pred_check
          %p820 = pneg %p819
        $region50: #{tpu_custom_call.1} parent=39 // pred_check_branch
          %822 = sbr.rel (%p820) target = $region52
        $region51: #{tpu_custom_call.1} parent=39 // pred_region
          %v823 = vld [vmem:[#allocation2] sm:$0xff]
          %v824 = vld [vmem:[#allocation2 + $0x8] sm:$0xff]
          %v825 = vld [vmem:[#allocation2 + $0x10] sm:$0xff]
          %v826 = vadd.f32 %v823, %v799
          %v827 = vadd.f32 %v824, %v804
          %v828 = vadd.f32 %v825, %v809
          %829 = vst [vmem:[#allocation2] sm:$0xff] %v826
          %830 = vst [vmem:[#allocation2 + $0x8] sm:$0xff] %v827
          %831 = vst [vmem:[#allocation2 + $0x10] sm:$0xff] %v828
        $region52: #{tpu_custom_call.1} parent=39 // pred_fallthru
          _
        // Predicated region
        $region53: #{tpu_custom_call.1} parent=39 // pred_check
          %p832 = pneg %p812
        $region54: #{tpu_custom_call.1} parent=39 // pred_check_branch
          %834 = sbr.rel (%p832) target = $region56
        $region55: #{tpu_custom_call.1} parent=39 // pred_region
          %v835 = vld [vmem:[#allocation2] sm:$0xff]
          %v836 = vld [vmem:[#allocation2 + $0x8] sm:$0xff]
          %v837 = vld [vmem:[#allocation2 + $0x10] sm:$0xff]
          %838 = vst [vmem:[%s291] sm:$0xff] %v835
          %839 = vst [vmem:[%s291 + $0x8] sm:$0xff] %v836
          %840 = vst [vmem:[%s291 + $0x10] sm:$0xff] %v837
        $region56: #{tpu_custom_call.1} parent=39 // pred_fallthru
          _
        %s841 = sand.u32 %s165, 1
        %s842 = scalar_lea.sflag [#allocation5], %s841
        %s843 = sand.u32 %s165, 1
        %s844 = smul.addr %s843, 24
        %s845 = scalar_lea.vmem [#allocation6], %s844
        // Predicated region
        $region57: #{tpu_custom_call.1} parent=39 // pred_check
          %p846 = pneg %p175
        $region58: #{tpu_custom_call.1} parent=39 // pred_check_branch
          %848 = sbr.rel (%p846) target = $region60
        $region59: #{tpu_custom_call.1} parent=39 // pred_region
          %s849 = smul.u32 3, %s24
          %s851 = ssub.s32 384, 384
          %852 = vsyncadd %s842, %s851
          %s853 = smul.addr %s849, 128
          %s854 = scalar_lea.hbm %s5, %s853
          %s855 = sshll.u32 %s845, 4
          %s856 = int_to_ptr.vmem [resolvable:$true] %s855
          %861 = dma.vmem_to_hbm [thread:$0]  %s856, 384, %s854, %s842, 128, 128, 8
        $region60: #{tpu_custom_call.1} parent=39 // pred_fallthru
          _
      $region40: #{tpu_custom_call.1} parent=5 // pred_fallthru
        _
      %p862 = scmp.le.s32.totalorder 2, %s15
      // Predicated region
      $region61: #{tpu_custom_call.1} parent=5 // pred_check
        %p863 = pneg %p862
      $region62: #{tpu_custom_call.1} parent=5 // pred_check_branch
        %865 = sbr.rel (%p863) target = $region64
      $region63: #{tpu_custom_call.1} parent=5 // pred_region
        %s866 = ssub.s32 %s15, 2
        // Predicated region
        $region65: #{tpu_custom_call.1} parent=63 // pred_check
          %p867 = pneg %p181
        $region66: #{tpu_custom_call.1} parent=63 // pred_check_branch
          %869 = sbr.rel (%p867) target = $region68
        $region67: #{tpu_custom_call.1} parent=63 // pred_region
          %s870 = sand.u32 %s166, 1
          %s871 = scalar_lea.sflag [#allocation5], %s870
          %s872 = sand.u32 %s166, 1
          %s873 = smul.addr %s872, 24
          %s874 = scalar_lea.vmem [#allocation6], %s873
          %875 = dma.done %s871, 384
        $region68: #{tpu_custom_call.1} parent=63 // pred_fallthru
          _
      $region64: #{tpu_custom_call.1} parent=5 // pred_fallthru
        _
    $region6: #{tpu_custom_call.1} parent=1 // loop_footer
      %s19 = sadd.s32 1, %s15
    $region7: #{tpu_custom_call.1} parent=1 // loop_footer_branch
      %14 = sbr.rel target = $region3
    $region8: #{tpu_custom_call.1} parent=1 // loop_exit
      _
    %876 = vsyncpa [#allocation4], 1
    %s877 = scalar_lea.sflag [#allocation4], 1
    %878 = vsyncpa %s877, 1
    %879 = vsyncpa [#allocation5], 1
    %s880 = scalar_lea.sflag [#allocation5], 1
    %881 = vsyncpa %s880, 1

</llo_original>
